<compile_context>
chip_gen: v5e
topology: v5e:2x2
jax: 0.10.0
libtpu: 0.0.40
codegen_flags: <defaults>
</compile_context>

<pallas_src>
import functools

import jax
import jax.numpy as jnp
from jax import lax
from jax.experimental import pallas as pl
from jax.experimental.pallas import tpu as pltpu

_NEG_BIG = -1e30  # finite "-inf" stand-in (avoids inf-inf NaNs in the online max)


def _round_up(x, m):
    return ((x + m - 1) // m) * m


def _ltr_kernel(lhs_ref, sol_ref, out_ref,
                m_p, l_p, m_t, l_t, s_t,
                *, btile, ptile, p_valid, p_pad):
    """One (batch-tile, pool-tile) step of the listwise LTR loss."""
    pj = pl.program_id(1)
    n_ptiles = pl.num_programs(1)

    @pl.when(pj == 0)
    def _init():
        neg = jnp.full((btile, 1), _NEG_BIG, jnp.float32)
        m_p[...] = neg
        m_t[...] = neg
        l_p[...] = jnp.zeros((btile, 1), jnp.float32)
        l_t[...] = jnp.zeros((btile, 1), jnp.float32)
        s_t[...] = jnp.zeros((btile, 1), jnp.float32)

    lhs = lhs_ref[...]                       # (2*btile, D) f32: [pred ; true] rows
    sol = sol_ref[...].astype(jnp.float32)   # (D, ptile), stored bf16 (exact: binary)

    # Single fused MXU matmul for both cost vectors against the shared pool tile.
    obj = jnp.dot(lhs, sol, preferred_element_type=jnp.float32)  # (2*btile, ptile)

    # Minimization convention: lower objective -> higher rank probability.
    neg_p = -obj[:btile, :]     # predicted-cost scores
    neg_t = -obj[btile:, :]     # true-cost scores

    if p_pad != p_valid:
        # Mask padded pool columns so they carry no probability mass.
        cols = pj * ptile + lax.broadcasted_iota(jnp.int32, (btile, ptile), 1)
        valid = cols < p_valid
        neg_p = jnp.where(valid, neg_p, _NEG_BIG)
        neg_t = jnp.where(valid, neg_t, _NEG_BIG)

    # --- online logsumexp of the predicted scores -------------------------
    m_p_new = jnp.maximum(m_p[...], jnp.max(neg_p, axis=-1, keepdims=True))
    alpha_p = jnp.exp(m_p[...] - m_p_new)
    l_p[...] = alpha_p * l_p[...] + jnp.sum(jnp.exp(neg_p - m_p_new),
                                            axis=-1, keepdims=True)
    m_p[...] = m_p_new

    # --- online (unnormalized) true softmax + cross term q * neg_p --------
    m_t_new = jnp.maximum(m_t[...], jnp.max(neg_t, axis=-1, keepdims=True))
    alpha_t = jnp.exp(m_t[...] - m_t_new)
    e_t = jnp.exp(neg_t - m_t_new)                                  # (btile, ptile)
    l_t[...] = alpha_t * l_t[...] + jnp.sum(e_t, axis=-1, keepdims=True)
    s_t[...] = alpha_t * s_t[...] + jnp.sum(e_t * neg_p, axis=-1, keepdims=True)
    m_t[...] = m_t_new

    @pl.when(pj == n_ptiles - 1)
    def _finalize():
        log_z_p = m_p[...] + jnp.log(l_p[...])
        # Exact divide: only (btile, 1) elements, once per batch tile, so the
        # VPU cost is negligible and full f32 accuracy is kept.
        per_sample = log_z_p - s_t[...] / l_t[...]
        out_ref[...] = per_sample.astype(out_ref.dtype)


def ltr_rank_loss(pred_cost, true_cost, solpool, *, reduction="mean",
                  btile_max=128, ptile_max=512):
    """Listwise learning-to-rank loss over a solution pool."""
    assert pred_cost.shape == true_cost.shape
    assert pred_cost.shape[1] == solpool.shape[1]

    B, D = pred_cost.shape
    P = solpool.shape[0]

    # --- tile sizes / padding (lane-dense pool axis, sublane-dense batch) --
    btile = min(btile_max, _round_up(B, 8))
    b_pad = _round_up(B, btile)
    nb = b_pad // btile

    ptile = min(ptile_max, _round_up(P, 128))
    p_pad = _round_up(P, ptile)
    n_ptiles = p_pad // ptile

    f32 = jnp.float32
    pred_p = jnp.zeros((b_pad, D), f32).at[:B].set(pred_cost.astype(f32))
    true_p = jnp.zeros((b_pad, D), f32).at[:B].set(true_cost.astype(f32))

    # Interleave per batch tile: rows [2*i*btile : (2i+1)*btile] = pred tile i,
    # rows [(2i+1)*btile : (2i+2)*btile] = true tile i  -> one fused matmul LHS.
    lhs = jnp.concatenate(
        [pred_p.reshape(nb, btile, D), true_p.reshape(nb, btile, D)], axis=1
    ).reshape(2 * b_pad, D)

    # Pre-transposed pool: (D, P_pad), bf16 (exact for binary solutions).
    sol_t = jnp.zeros((D, p_pad), jnp.bfloat16).at[:, :P].set(
        solpool.T.astype(jnp.bfloat16))

    kernel = functools.partial(
        _ltr_kernel, btile=btile, ptile=ptile, p_valid=P, p_pad=p_pad)

    cost = pl.CostEstimate(
        flops=2 * (2 * b_pad) * p_pad * D,
        transcendentals=2 * b_pad * p_pad,
        bytes_accessed=(2 * b_pad * D * 4) + nb * (D * p_pad * 2) + b_pad * 4,
    )

    per_sample = pl.pallas_call(
        kernel,
        out_shape=jax.ShapeDtypeStruct((b_pad, 1), jnp.float32),
        grid_spec=pltpu.PrefetchScalarGridSpec(
            num_scalar_prefetch=0,
            grid=(nb, n_ptiles),
            in_specs=[
                pl.BlockSpec((2 * btile, D), lambda i, j: (i, 0)),
                pl.BlockSpec((D, ptile), lambda i, j: (0, j)),
            ],
            out_specs=pl.BlockSpec((btile, 1), lambda i, j: (i, 0)),
            scratch_shapes=[pltpu.VMEM((btile, 1), jnp.float32)] * 5,
        ),
        compiler_params=pltpu.CompilerParams(
            dimension_semantics=("parallel", "arbitrary"),
            vmem_limit_bytes=32 * 1024 * 1024,
        ),
        cost_estimate=cost,
    )(lhs, sol_t)

    per_sample = per_sample[:B, 0]
    if reduction == "mean":
        return jnp.sum(per_sample) / B
    if reduction == "sum":
        return jnp.sum(per_sample)
    return per_sample  # 'none'


def ltr_rank_loss_ref(pred_cost, true_cost, solpool):
    """Pure-JAX reference for correctness checking."""
    obj_pred = pred_cost @ solpool.T
    obj_true = true_cost @ solpool.T
    log_p = jax.nn.log_softmax(-obj_pred, axis=-1)
    q = jax.nn.softmax(-obj_true, axis=-1)
    return jnp.mean(-jnp.sum(q * log_p, axis=-1))


if __name__ == "__main__":
    # TODO(synk): the abstract forward dispatch, optmodel.solve() calls,
    # multiprocessing pool, and torch.unique-based solution-pool updates have
    # no Pallas equivalent; a deterministic synthetic solution pool stands in
    # for dataset.sols.
    key = jax.random.PRNGKey(0)
    k1, k2, k3 = jax.random.split(key, 3)

    batch, n_costs, pool_size = 8, 32, 16
    pred_cost = jax.random.normal(k1, (batch, n_costs), dtype=jnp.float32)
    true_cost = jax.random.normal(k2, (batch, n_costs), dtype=jnp.float32)
    # Binary feasible solutions (e.g. selection vectors), deterministic.
    solpool = (jax.random.uniform(k3, (pool_size, n_costs)) > 0.5).astype(jnp.float32)

    loss = jax.block_until_ready(ltr_rank_loss(pred_cost, true_cost, solpool))
    loss_ref = jax.block_until_ready(ltr_rank_loss_ref(pred_cost, true_cost, solpool))

    assert jnp.isfinite(loss), "non-finite loss"
    assert jnp.allclose(loss, loss_ref, rtol=1e-4, atol=1e-5), (loss, loss_ref)
    print("KERNEL_OK")
</pallas_src>

<mosaic_0001>
module attributes {stable_mosaic.version = 11 : i64} {
  func.func @_ltr_kernel(%arg0: i32, %arg1: i32, %arg2: memref<16x32xf32, #tpu.memory_space<vmem>>, %arg3: memref<32x128xbf16, #tpu.memory_space<vmem>>, %arg4: memref<8x1xf32, #tpu.memory_space<vmem>>, %arg5: memref<8x1xf32, #tpu.memory_space<vmem>>, %arg6: memref<8x1xf32, #tpu.memory_space<vmem>>, %arg7: memref<8x1xf32, #tpu.memory_space<vmem>>, %arg8: memref<8x1xf32, #tpu.memory_space<vmem>>, %arg9: memref<8x1xf32, #tpu.memory_space<vmem>>) attributes {dimension_semantics = [#tpu.dimension_semantics<parallel>, #tpu.dimension_semantics<arbitrary>], iteration_bounds = array<i64: 1, 1>, scalar_prefetch = 0 : i64, scratch_operands = 5 : i64, tpu.core_type = #tpu.core_type<tc>, window_params = [{transform_indices = @transform_0, window_bounds = array<i64: 16, 32>}, {transform_indices = @transform_1, window_bounds = array<i64: 32, 128>}, {transform_indices = @transform_2, window_bounds = array<i64: 8, 1>}]} {
    %c0_i32 = arith.constant 0 : i32
    %0 = arith.cmpi eq, %arg1, %c0_i32 : i32
    %1 = arith.extui %0 : i1 to i32
    %c0_i32_0 = arith.constant 0 : i32
    %2 = arith.cmpi ne, %1, %c0_i32_0 : i32
    scf.if %2 {
      %cst_39 = arith.constant -1.000000e+30 : f32
      %67 = vector.broadcast %cst_39 : f32 to vector<8x1xf32>
      %c0_40 = arith.constant 0 : index
      %c0_41 = arith.constant 0 : index
      %68 = vector.load %arg5[%c0_40, %c0_41] : memref<8x1xf32, #tpu.memory_space<vmem>>, vector<8x1xf32>
      tpu.vector_store %arg5[%c0_40, %c0_41], %67 {strides = array<i32>} : memref<8x1xf32, #tpu.memory_space<vmem>>, vector<8x1xf32>,
      %c0_42 = arith.constant 0 : index
      %c0_43 = arith.constant 0 : index
      %69 = vector.load %arg7[%c0_42, %c0_43] : memref<8x1xf32, #tpu.memory_space<vmem>>, vector<8x1xf32>
      tpu.vector_store %arg7[%c0_42, %c0_43], %67 {strides = array<i32>} : memref<8x1xf32, #tpu.memory_space<vmem>>, vector<8x1xf32>,
      %cst_44 = arith.constant 0.000000e+00 : f32
      %70 = vector.broadcast %cst_44 : f32 to vector<8x1xf32>
      %c0_45 = arith.constant 0 : index
      %c0_46 = arith.constant 0 : index
      %71 = vector.load %arg6[%c0_45, %c0_46] : memref<8x1xf32, #tpu.memory_space<vmem>>, vector<8x1xf32>
      tpu.vector_store %arg6[%c0_45, %c0_46], %70 {strides = array<i32>} : memref<8x1xf32, #tpu.memory_space<vmem>>, vector<8x1xf32>,
      %cst_47 = arith.constant 0.000000e+00 : f32
      %72 = vector.broadcast %cst_47 : f32 to vector<8x1xf32>
      %c0_48 = arith.constant 0 : index
      %c0_49 = arith.constant 0 : index
      %73 = vector.load %arg8[%c0_48, %c0_49] : memref<8x1xf32, #tpu.memory_space<vmem>>, vector<8x1xf32>
      tpu.vector_store %arg8[%c0_48, %c0_49], %72 {strides = array<i32>} : memref<8x1xf32, #tpu.memory_space<vmem>>, vector<8x1xf32>,
      %cst_50 = arith.constant 0.000000e+00 : f32
      %74 = vector.broadcast %cst_50 : f32 to vector<8x1xf32>
      %c0_51 = arith.constant 0 : index
      %c0_52 = arith.constant 0 : index
      %75 = vector.load %arg9[%c0_51, %c0_52] : memref<8x1xf32, #tpu.memory_space<vmem>>, vector<8x1xf32>
      tpu.vector_store %arg9[%c0_51, %c0_52], %74 {strides = array<i32>} : memref<8x1xf32, #tpu.memory_space<vmem>>, vector<8x1xf32>,
    } else {
    }
    %c0 = arith.constant 0 : index
    %c0_1 = arith.constant 0 : index
    %3 = vector.load %arg2[%c0, %c0_1] : memref<16x32xf32, #tpu.memory_space<vmem>>, vector<16x32xf32>
    %c0_2 = arith.constant 0 : index
    %c0_3 = arith.constant 0 : index
    %4 = vector.load %arg3[%c0_2, %c0_3] : memref<32x128xbf16, #tpu.memory_space<vmem>>, vector<32x128xbf16>
    %5 = arith.extf %4 : vector<32x128xbf16> to vector<32x128xf32>
    %cst = arith.constant dense<0.000000e+00> : vector<16x128xf32>
    %6 = tpu.matmul %3, %5, %cst {dimension_numbers = #tpu.dot_dimension_numbers<[1], [0], [0], [1], [0, 0, 1, 1], [], []>} : vector<16x32xf32>, vector<32x128xf32>, vector<16x128xf32> -> vector<16x128xf32>
    %7 = vector.extract_strided_slice %6 {offsets = [0, 0], sizes = [8, 128], strides = [1, 1]} : vector<16x128xf32> to vector<8x128xf32>
    %cst_4 = arith.constant 0.000000e+00 : f32
    %8 = vector.broadcast %cst_4 : f32 to vector<8x128xf32>
    %9 = arith.subf %8, %7 : vector<8x128xf32>
    %10 = vector.extract_strided_slice %6 {offsets = [8, 0], sizes = [8, 128], strides = [1, 1]} : vector<16x128xf32> to vector<8x128xf32>
    %cst_5 = arith.constant 0.000000e+00 : f32
    %11 = vector.broadcast %cst_5 : f32 to vector<8x128xf32>
    %12 = arith.subf %11, %10 : vector<8x128xf32>
    %c128_i32 = arith.constant 128 : i32
    %13 = arith.muli %arg1, %c128_i32 : i32
    %14 = tpu.iota {dimensions = array<i32: 1>} : vector<8x128xi32>
    %15 = vector.broadcast %13 : i32 to vector<8x128xi32>
    %16 = arith.addi %15, %14 : vector<8x128xi32>
    %c16_i32 = arith.constant 16 : i32
    %17 = vector.broadcast %c16_i32 : i32 to vector<8x128xi32>
    %18 = arith.cmpi slt, %16, %17 : vector<8x128xi32>
    %cst_6 = arith.constant -1.000000e+30 : f32
    %19 = vector.broadcast %cst_6 : f32 to vector<8x128xf32>
    %20 = arith.select %18, %9, %19 : vector<8x128xi1>, vector<8x128xf32>
    %cst_7 = arith.constant -1.000000e+30 : f32
    %21 = vector.broadcast %cst_7 : f32 to vector<8x128xf32>
    %22 = arith.select %18, %12, %21 : vector<8x128xi1>, vector<8x128xf32>
    %c0_8 = arith.constant 0 : index
    %c0_9 = arith.constant 0 : index
    %23 = vector.load %arg5[%c0_8, %c0_9] : memref<8x1xf32, #tpu.memory_space<vmem>>, vector<8x1xf32>
    %cst_10 = arith.constant dense<0xFF800000> : vector<8xf32>
    %24 = vector.multi_reduction <maximumf>, %20, %cst_10 [1] : vector<8x128xf32> to vector<8xf32>
    %25 = vector.shape_cast %24 : vector<8xf32> to vector<8x1xf32>
    %26 = arith.maximumf %23, %25 : vector<8x1xf32>
    %c0_11 = arith.constant 0 : index
    %c0_12 = arith.constant 0 : index
    %27 = vector.load %arg5[%c0_11, %c0_12] : memref<8x1xf32, #tpu.memory_space<vmem>>, vector<8x1xf32>
    %28 = arith.subf %27, %26 : vector<8x1xf32>
    %29 = math.exp %28 : vector<8x1xf32>
    %c0_13 = arith.constant 0 : index
    %c0_14 = arith.constant 0 : index
    %30 = vector.load %arg6[%c0_13, %c0_14] : memref<8x1xf32, #tpu.memory_space<vmem>>, vector<8x1xf32>
    %31 = arith.mulf %29, %30 : vector<8x1xf32>
    %32 = vector.broadcast %26 : vector<8x1xf32> to vector<8x128xf32>
    %33 = arith.subf %20, %32 : vector<8x128xf32>
    %34 = math.exp %33 : vector<8x128xf32>
    %cst_15 = arith.constant dense<0.000000e+00> : vector<8xf32>
    %35 = vector.multi_reduction <add>, %34, %cst_15 [1] : vector<8x128xf32> to vector<8xf32>
    %36 = vector.shape_cast %35 : vector<8xf32> to vector<8x1xf32>
    %37 = arith.addf %31, %36 : vector<8x1xf32>
    %c0_16 = arith.constant 0 : index
    %c0_17 = arith.constant 0 : index
    %38 = vector.load %arg6[%c0_16, %c0_17] : memref<8x1xf32, #tpu.memory_space<vmem>>, vector<8x1xf32>
    tpu.vector_store %arg6[%c0_16, %c0_17], %37 {strides = array<i32>} : memref<8x1xf32, #tpu.memory_space<vmem>>, vector<8x1xf32>,
    %c0_18 = arith.constant 0 : index
    %c0_19 = arith.constant 0 : index
    %39 = vector.load %arg5[%c0_18, %c0_19] : memref<8x1xf32, #tpu.memory_space<vmem>>, vector<8x1xf32>
    tpu.vector_store %arg5[%c0_18, %c0_19], %26 {strides = array<i32>} : memref<8x1xf32, #tpu.memory_space<vmem>>, vector<8x1xf32>,
    %c0_20 = arith.constant 0 : index
    %c0_21 = arith.constant 0 : index
    %40 = vector.load %arg7[%c0_20, %c0_21] : memref<8x1xf32, #tpu.memory_space<vmem>>, vector<8x1xf32>
    %cst_22 = arith.constant dense<0xFF800000> : vector<8xf32>
    %41 = vector.multi_reduction <maximumf>, %22, %cst_22 [1] : vector<8x128xf32> to vector<8xf32>
    %42 = vector.shape_cast %41 : vector<8xf32> to vector<8x1xf32>
    %43 = arith.maximumf %40, %42 : vector<8x1xf32>
    %c0_23 = arith.constant 0 : index
    %c0_24 = arith.constant 0 : index
    %44 = vector.load %arg7[%c0_23, %c0_24] : memref<8x1xf32, #tpu.memory_space<vmem>>, vector<8x1xf32>
    %45 = arith.subf %44, %43 : vector<8x1xf32>
    %46 = math.exp %45 : vector<8x1xf32>
    %47 = vector.broadcast %43 : vector<8x1xf32> to vector<8x128xf32>
    %48 = arith.subf %22, %47 : vector<8x128xf32>
    %49 = math.exp %48 : vector<8x128xf32>
    %c0_25 = arith.constant 0 : index
    %c0_26 = arith.constant 0 : index
    %50 = vector.load %arg8[%c0_25, %c0_26] : memref<8x1xf32, #tpu.memory_space<vmem>>, vector<8x1xf32>
    %51 = arith.mulf %46, %50 : vector<8x1xf32>
    %cst_27 = arith.constant dense<0.000000e+00> : vector<8xf32>
    %52 = vector.multi_reduction <add>, %49, %cst_27 [1] : vector<8x128xf32> to vector<8xf32>
    %53 = vector.shape_cast %52 : vector<8xf32> to vector<8x1xf32>
    %54 = arith.addf %51, %53 : vector<8x1xf32>
    %c0_28 = arith.constant 0 : index
    %c0_29 = arith.constant 0 : index
    %55 = vector.load %arg8[%c0_28, %c0_29] : memref<8x1xf32, #tpu.memory_space<vmem>>, vector<8x1xf32>
    tpu.vector_store %arg8[%c0_28, %c0_29], %54 {strides = array<i32>} : memref<8x1xf32, #tpu.memory_space<vmem>>, vector<8x1xf32>,
    %c0_30 = arith.constant 0 : index
    %c0_31 = arith.constant 0 : index
    %56 = vector.load %arg9[%c0_30, %c0_31] : memref<8x1xf32, #tpu.memory_space<vmem>>, vector<8x1xf32>
    %57 = arith.mulf %46, %56 : vector<8x1xf32>
    %58 = arith.mulf %49, %20 : vector<8x128xf32>
    %cst_32 = arith.constant dense<0.000000e+00> : vector<8xf32>
    %59 = vector.multi_reduction <add>, %58, %cst_32 [1] : vector<8x128xf32> to vector<8xf32>
    %60 = vector.shape_cast %59 : vector<8xf32> to vector<8x1xf32>
    %61 = arith.addf %57, %60 : vector<8x1xf32>
    %c0_33 = arith.constant 0 : index
    %c0_34 = arith.constant 0 : index
    %62 = vector.load %arg9[%c0_33, %c0_34] : memref<8x1xf32, #tpu.memory_space<vmem>>, vector<8x1xf32>
    tpu.vector_store %arg9[%c0_33, %c0_34], %61 {strides = array<i32>} : memref<8x1xf32, #tpu.memory_space<vmem>>, vector<8x1xf32>,
    %c0_35 = arith.constant 0 : index
    %c0_36 = arith.constant 0 : index
    %63 = vector.load %arg7[%c0_35, %c0_36] : memref<8x1xf32, #tpu.memory_space<vmem>>, vector<8x1xf32>
    tpu.vector_store %arg7[%c0_35, %c0_36], %43 {strides = array<i32>} : memref<8x1xf32, #tpu.memory_space<vmem>>, vector<8x1xf32>,
    %c0_i32_37 = arith.constant 0 : i32
    %64 = arith.cmpi eq, %arg1, %c0_i32_37 : i32
    %65 = arith.extui %64 : i1 to i32
    %c0_i32_38 = arith.constant 0 : i32
    %66 = arith.cmpi ne, %65, %c0_i32_38 : i32
    scf.if %66 {
      %c0_39 = arith.constant 0 : index
      %c0_40 = arith.constant 0 : index
      %67 = vector.load %arg5[%c0_39, %c0_40] : memref<8x1xf32, #tpu.memory_space<vmem>>, vector<8x1xf32>
      %c0_41 = arith.constant 0 : index
      %c0_42 = arith.constant 0 : index
      %68 = vector.load %arg6[%c0_41, %c0_42] : memref<8x1xf32, #tpu.memory_space<vmem>>, vector<8x1xf32>
      %69 = math.log %68 : vector<8x1xf32>
      %70 = arith.addf %67, %69 : vector<8x1xf32>
      %c0_43 = arith.constant 0 : index
      %c0_44 = arith.constant 0 : index
      %71 = vector.load %arg9[%c0_43, %c0_44] : memref<8x1xf32, #tpu.memory_space<vmem>>, vector<8x1xf32>
      %c0_45 = arith.constant 0 : index
      %c0_46 = arith.constant 0 : index
      %72 = vector.load %arg8[%c0_45, %c0_46] : memref<8x1xf32, #tpu.memory_space<vmem>>, vector<8x1xf32>
      %73 = arith.divf %71, %72 : vector<8x1xf32>
      %74 = arith.subf %70, %73 : vector<8x1xf32>
      %c0_47 = arith.constant 0 : index
      %c0_48 = arith.constant 0 : index
      %75 = vector.load %arg4[%c0_47, %c0_48] : memref<8x1xf32, #tpu.memory_space<vmem>>, vector<8x1xf32>
      tpu.vector_store %arg4[%c0_47, %c0_48], %74 {strides = array<i32>} : memref<8x1xf32, #tpu.memory_space<vmem>>, vector<8x1xf32>,
    } else {
    }
    return
  }
  func.func @transform_0(%arg0: i32, %arg1: i32) -> (i32, i32) {
    %c0_i32 = arith.constant 0 : i32
    %c0_i32_0 = arith.constant 0 : i32
    return %arg0, %c0_i32 : i32, i32
  }
  func.func @transform_1(%arg0: i32, %arg1: i32) -> (i32, i32) {
    %c0_i32 = arith.constant 0 : i32
    %c0_i32_0 = arith.constant 0 : i32
    return %c0_i32, %arg1 : i32, i32
  }
  func.func @transform_2(%arg0: i32, %arg1: i32) -> (i32, i32) {
    %c0_i32 = arith.constant 0 : i32
    %c0_i32_0 = arith.constant 0 : i32
    return %arg0, %c0_i32 : i32, i32
  }
}

</mosaic_0001>

<llo_original>
// kernel: tpu_custom_call.1
$region0: #{tpu_custom_call.1}
  #allocation0 [shape = 'u32[]', space=smem, size = 0x4, offset = 0x4, fixed_abs, tag = 'smem constant byte address 0x4 - core index']
  #allocation1 [shape = 'u32[72,128]{1,0:T(1,128)}', space=vmem, size = 0x9000, scoped, tag = 'internal scratch']
  #allocation2 [shape = 'f32[8,1]{1,0:T(8,128)}', space=vmem, size = 0x1000, scoped, tag = 'scratch operand']
  #allocation3 [shape = 'f32[8,1]{1,0:T(8,128)}', space=vmem, size = 0x1000, scoped, tag = 'scratch operand']
  #allocation4 [shape = 'f32[8,1]{1,0:T(8,128)}', space=vmem, size = 0x1000, scoped, tag = 'scratch operand']
  #allocation5 [shape = 'f32[8,1]{1,0:T(8,128)}', space=vmem, size = 0x1000, scoped, tag = 'scratch operand']
  #allocation6 [shape = 'f32[8,1]{1,0:T(8,128)}', space=vmem, size = 0x1000, scoped, tag = 'scratch operand']
  %s0 = inlined_call_operand.hbm [shape: f32[16,32], index: 0, kind: input, shape index: {}]
  %s1 = inlined_call_operand.hbm [shape: bf16[32,128], index: 1, kind: input, shape index: {}]
  %s2 = inlined_call_operand.vmem [shape: f32[8,1], index: 2, kind: output, shape index: {}]
  %s3 = sld [smem:[#allocation0]]
  $region34: #{tpu_custom_call.1} parent=0
    _
  %s5 = ssub.s32 1, %s3
  %s6 = scalar_select 0, %s5, %s3
  $region1: #{tpu_custom_call.1} parent=0
    #allocation7 [shape = 'u8[8192]{0}', space=vmem, size = 0x2000, scoped, tag = 'input window, operand 0, single buffered']
    #allocation8 [shape = 's32[1]{0}', space=sflag, size = 0x4, scoped, tag = 'scoped memory for tpu_custom_call.1']
    #allocation9 [shape = 'u8[8192]{0}', space=vmem, size = 0x2000, scoped, tag = 'input window, operand 1, single buffered']
    #allocation10 [shape = 's32[1]{0}', space=sflag, size = 0x4, scoped, tag = 'scoped memory for tpu_custom_call.1']
    %7 = vsyncpa [#allocation8], 0
    %8 = vsyncpa [#allocation10], 0
    // Predicated region
    $region2: #{tpu_custom_call.1} parent=1 // pred_check
      _
    $region3: #{tpu_custom_call.1} parent=1 // pred_check_branch
      %10 = sbr.rel (0) target = $region5
    $region4: #{tpu_custom_call.1} parent=1 // pred_region
      %12 = vsyncadd [#allocation8], 0
      %s13 = sshll.u32 %s0, 4
      %s14 = int_to_ptr.hbm [resolvable:$true] %s13
      %s15 = sshll.u32 [#allocation7], 4
      %s16 = int_to_ptr.vmem [resolvable:$true] %s15
      %21 = dma.hbm_to_vmem [thread:$0]  %s14, 256, %s16, [#allocation8], 128, 128, 8
    $region5: #{tpu_custom_call.1} parent=1 // pred_fallthru
      _
    // Predicated region
    $region6: #{tpu_custom_call.1} parent=1 // pred_check
      _
    $region7: #{tpu_custom_call.1} parent=1 // pred_check_branch
      %23 = sbr.rel (0) target = $region9
    $region8: #{tpu_custom_call.1} parent=1 // pred_region
      %25 = vsyncadd [#allocation10], 0
      %s26 = sshll.u32 %s1, 4
      %s27 = int_to_ptr.hbm [resolvable:$true] %s26
      %s28 = sshll.u32 [#allocation9], 4
      %s29 = int_to_ptr.vmem [resolvable:$true] %s28
      %34 = dma.hbm_to_vmem [thread:$0]  %s27, 256, %s29, [#allocation10], 64, 64, 4
    $region9: #{tpu_custom_call.1} parent=1 // pred_fallthru
      _
    // Predicated region
    $region10: #{tpu_custom_call.1} parent=1 // pred_check
      _
    $region11: #{tpu_custom_call.1} parent=1 // pred_check_branch
      %36 = sbr.rel (0) target = $region13
    $region12: #{tpu_custom_call.1} parent=1 // pred_region
      %38 = dma.done [#allocation8], 256
    $region13: #{tpu_custom_call.1} parent=1 // pred_fallthru
      _
    // Predicated region
    $region14: #{tpu_custom_call.1} parent=1 // pred_check
      _
    $region15: #{tpu_custom_call.1} parent=1 // pred_check_branch
      %40 = sbr.rel (0) target = $region17
    $region16: #{tpu_custom_call.1} parent=1 // pred_region
      %42 = dma.done [#allocation10], 256
    $region17: #{tpu_custom_call.1} parent=1 // pred_fallthru
      _
    %p43 = scmp.eq.s32.totalorder 0, 0
    // Predicated region
    $region18: #{tpu_custom_call.1} parent=1 // pred_check
      %p44 = pneg %p43
    $region19: #{tpu_custom_call.1} parent=1 // pred_check_branch
      %46 = sbr.rel (%p44) target = $region21
    $region20: #{tpu_custom_call.1} parent=1 // pred_region
      %vm47 = vcmask 7168
      %48 = vst.msk [vmem:[#allocation2] sm:$0xff] %vm47, -1e+30
      %49 = vst.msk [vmem:[#allocation4] sm:$0xff] %vm47, -1e+30
      %50 = vst.msk [vmem:[#allocation3] sm:$0xff] %vm47, 0.0
      %51 = vst.msk [vmem:[#allocation5] sm:$0xff] %vm47, 0.0
      %52 = vst.msk [vmem:[#allocation6] sm:$0xff] %vm47, 0.0
    $region21: #{tpu_custom_call.1} parent=1 // pred_fallthru
      _
    %v53 = vld [vmem:[#allocation7] sm:$0xff]
    %v54 = vld [vmem:[#allocation7 + $0x8] sm:$0xff]
    %v55 = vld [vmem:[#allocation9] sm:$0xf]
    %v56 = vld [vmem:[#allocation9 + $0x4] sm:$0xf]
    %v57 = vld [vmem:[#allocation9 + $0x8] sm:$0xf]
    %v58 = vld [vmem:[#allocation9 + $0xc] sm:$0xf]
    %v59 = vunpack.c.l.bf16 %v55
    %v60 = vunpack.c.l.bf16 %v56
    %v61 = vunpack.c.l.bf16 %v57
    %v62 = vunpack.c.l.bf16 %v58
    %vm63 = vcmask 261120
    %v65 = vsel %vm63, %v53, 0
    %v68 = vsel %vm63, %v54, 0
    %70 = vmatpush.msra.mxu0 0.0
    %71 = vmatpush.msra.mxu0 0.0
    %72 = vmatpush.msra.mxu0 0.0
    %73 = vmatpush.msra.mxu0 0.0
    %74 = vmatpush.msra.mxu0 0.0
    %75 = vmatpush.msra.mxu0 0.0
    %76 = vmatpush.msra.mxu0 0.0
    %77 = vmatpush.msra.mxu0 0.0
    %78 = vmatpush.msra.mxu0 0.0
    %79 = vmatpush.msra.mxu0 0.0
    %80 = vmatpush.msra.mxu0 0.0
    %81 = vmatpush.msra.mxu0 0.0
    %82 = vmatpush.msra.mxu0 %v62
    %83 = vmatpush.msra.mxu0 %v61
    %84 = vmatpush.msra.mxu0 %v60
    %85 = vmatpush.msra.mxu0 %v59
    %86 = vmatmul.f32.gmra.mxu0 %v65
    %v87 = vpop.f32.mrf.mxu0
    %v88 = vadd.f32 0.0, %v87
    %89 = vmatmul.f32.gmra.mxu0 %v68
    %v90 = vpop.f32.mrf.mxu0
    %v91 = vadd.f32 0.0, %v90
    %92 = vdwg.mxu0
    %v93 = vsub.f32 0.0, %v88
    %v94 = vsub.f32 0.0, %v91
    %s95 = smul.u32 0, 128
    %v96 = vlaneseq
    %v97 = vand.u32 %v96, 127
    %v98 = vstv %s95
    %v99 = vadd.s32 %v98, %v97
    %vm100 = vcmp.lt.s32.totalorder %v99, 16
    %v101 = vsel %vm100, %v93, -1e+30
    %v102 = vsel %vm100, %v94, -1e+30
    %v103 = vld [vmem:[#allocation2] sm:$0xff]
    %104 = vmax.xlane.f32.xlu0 %v101
    %v105 = vpop.xlane.xlu0 %104
    %v106 = vmax.f32 %v103, %v105
    %v107 = vsub.f32 %v103, %v106
    %v108 = vmul.f32 %v107, 1.442695
    %v109 = vpow.pop %v108
    %v110 = vld [vmem:[#allocation3] sm:$0xff]
    %v111 = vmul.f32 %v109, %v110
    %113 = vset.pattern.permute.xlu0 0
    %114 = vperm.xlu0 %113, %v106
    %v115 = vpop.permute.xlu0 %114
    %v117 = vsub.f32 %v101, %v115
    %v118 = vmul.f32 %v117, 1.442695
    %v119 = vpow.pop %v118
    %120 = vadd.xlane.f32.xlu0 %v119
    %v121 = vpop.xlane.xlu0 %120
    %v122 = vadd.f32 %v111, %v121
    %vm123 = vcmask 7168
    %124 = vst.msk [vmem:[#allocation3] sm:$0xff] %vm123, %v122
    %125 = vst.msk [vmem:[#allocation2] sm:$0xff] %vm123, %v106
    %v126 = vld [vmem:[#allocation4] sm:$0xff]
    %127 = vmax.xlane.f32.xlu0 %v102
    %v128 = vpop.xlane.xlu0 %127
    %v129 = vmax.f32 %v126, %v128
    %v130 = vsub.f32 %v126, %v129
    %v131 = vmul.f32 %v130, 1.442695
    %v132 = vpow.pop %v131
    %134 = vset.pattern.permute.xlu0 0
    %135 = vperm.xlu0 %134, %v129
    %v136 = vpop.permute.xlu0 %135
    %v138 = vsub.f32 %v102, %v136
    %v139 = vmul.f32 %v138, 1.442695
    %v140 = vpow.pop %v139
    %v141 = vld [vmem:[#allocation5] sm:$0xff]
    %v142 = vmul.f32 %v132, %v141
    %143 = vadd.xlane.f32.xlu0 %v140
    %v144 = vpop.xlane.xlu0 %143
    %v145 = vadd.f32 %v142, %v144
    %146 = vst.msk [vmem:[#allocation5] sm:$0xff] %vm123, %v145
    %v147 = vld [vmem:[#allocation6] sm:$0xff]
    %v148 = vmul.f32 %v132, %v147
    %v149 = vmul.f32 %v140, %v101
    %150 = vadd.xlane.f32.xlu0 %v149
    %v151 = vpop.xlane.xlu0 %150
    %v152 = vadd.f32 %v148, %v151
    %153 = vst.msk [vmem:[#allocation6] sm:$0xff] %vm123, %v152
    %154 = vst.msk [vmem:[#allocation4] sm:$0xff] %vm123, %v129
    // Predicated region
    $region22: #{tpu_custom_call.1} parent=1 // pred_check
      %p155 = pneg %p43
    $region23: #{tpu_custom_call.1} parent=1 // pred_check_branch
      %157 = sbr.rel (%p155) target = $region25
    $region24: #{tpu_custom_call.1} parent=1 // pred_region
      %v158 = vld [vmem:[#allocation2] sm:$0xff]
      %v159 = vld [vmem:[#allocation3] sm:$0xff]
      %v160 = vlog2.pop %v159
      %v161 = vmul.f32 %v160, 0.6931472
      %v162 = vadd.f32 %v158, %v161
      %v163 = vld [vmem:[#allocation6] sm:$0xff]
      %v164 = vld [vmem:[#allocation5] sm:$0xff]
      %v165 = vrcp.pop %v164
      %v166 = vmul.f32 %v164, %v165
      %v167 = vsub.f32 1.0, %v166
      %v168 = vmul.f32 %v165, %v167
      %v169 = vadd.f32 %v165, %v168
      %vm170 = vweird.f32 %v164
      %vm171 = vweird.f32 %v165
      %vm172 = vmor %vm170, %vm171
      %v173 = vsel %vm172, %v165, %v169
      %v174 = vand.u32 2147483647, %v164
      %vm175 = vcmp.eq.f32.partialorder %v174, 8.507059e+37
      %v176 = vand.u32 %v164, 2147483648
      %v177 = vor.u32 1.1754944e-38, %v176
      %v178 = vsel %vm175, %v177, %v173
      %v179 = vmul.f32 %v163, %v178
      %v180 = vsub.f32 %v162, %v179
      %181 = vst.msk [vmem:[%s2] sm:$0xff] %vm123, %v180
    $region25: #{tpu_custom_call.1} parent=1 // pred_fallthru
      _
    // Predicated region
    $region26: #{tpu_custom_call.1} parent=1 // pred_check
      _
    $region27: #{tpu_custom_call.1} parent=1 // pred_check_branch
      %183 = sbr.rel (0) target = $region29
    $region28: #{tpu_custom_call.1} parent=1 // pred_region
      _
    $region29: #{tpu_custom_call.1} parent=1 // pred_fallthru
      _
    // Predicated region
    $region30: #{tpu_custom_call.1} parent=1 // pred_check
      _
    $region31: #{tpu_custom_call.1} parent=1 // pred_check_branch
      %185 = sbr.rel (0) target = $region33
    $region32: #{tpu_custom_call.1} parent=1 // pred_region
      _
    $region33: #{tpu_custom_call.1} parent=1 // pred_fallthru
      _
    %186 = vsyncpa [#allocation8], 1
    %187 = vsyncpa [#allocation10], 1

</llo_original>
